<compile_context>
chip_gen: v6e
topology: v6e:2x2x1
jax: 0.10.0
libtpu: 0.0.40
codegen_flags: <defaults>
</compile_context>

<pallas_src>
import functools

import jax
import jax.numpy as jnp
from jax.experimental import pallas as pl
from jax.experimental.pallas import tpu as pltpu

NUM_FEATURES = 78
NUM_CLASSES = 15
H1, H2, H3 = 256, 128, 128     # default (dataset=None) branch of MLPNet


def _mlp_kernel(x_ref,
                w1_ref, b1_ref,
                w2_ref, b2_ref,
                w3_ref, b3_ref,
                w4_ref, b4_ref,
                o_ref,
                *, compute_dtype):
    """Fused 4-layer MLP forward for one batch tile (everything in VMEM).

    Weights arrive already cast to `compute_dtype` (bf16 by default -> peak
    MXU issue rate on every generation); accumulation, bias add and ReLU
    stay in f32 (no bf16 VPU on v5e).
    """
    x = x_ref[...].astype(compute_dtype)

    h = jnp.dot(x, w1_ref[...], preferred_element_type=jnp.float32) + b1_ref[...]
    h = jnp.maximum(h, 0.0).astype(compute_dtype)              # relu(fc1)

    h = jnp.dot(h, w2_ref[...], preferred_element_type=jnp.float32) + b2_ref[...]
    h = jnp.maximum(h, 0.0).astype(compute_dtype)              # relu(fc2)

    h = jnp.dot(h, w3_ref[...], preferred_element_type=jnp.float32) + b3_ref[...]
    h = jnp.maximum(h, 0.0).astype(compute_dtype)              # relu(fc3)

    out = jnp.dot(h, w4_ref[...], preferred_element_type=jnp.float32) + b4_ref[...]
    o_ref[...] = out.astype(o_ref.dtype)                       # fc4 (narrow, 15-wide)


def _xavier_uniform(key, fan_in, fan_out, dtype=jnp.float32):
    """Matches torch.nn.init.xavier_uniform_ (gain=1)."""
    limit = (6.0 / (fan_in + fan_out)) ** 0.5
    # Stored as (in, out) so the kernel can do x @ W.
    return jax.random.uniform(key, (fan_in, fan_out), dtype=dtype,
                              minval=-limit, maxval=limit)


def init_params(key):
    ks = jax.random.split(key, 4)
    return {
        "w1": _xavier_uniform(ks[0], NUM_FEATURES, H1),
        "b1": jnp.zeros((1, H1), jnp.float32),
        "w2": _xavier_uniform(ks[1], H1, H2),
        "b2": jnp.zeros((1, H2), jnp.float32),
        "w3": _xavier_uniform(ks[2], H2, H3),
        "b3": jnp.zeros((1, H3), jnp.float32),
        "w4": _xavier_uniform(ks[3], H3, NUM_CLASSES),
        "b4": jnp.zeros((1, NUM_CLASSES), jnp.float32),
    }


def _tensorcores_per_chip():
    """Best-effort TensorCore count per chip (2 on v7x, 1 on v5e/v6e)."""
    try:
        dev = jax.devices()[0]
        nc = getattr(dev, "num_cores", None)
        if isinstance(nc, int) and nc > 0:
            return min(nc, 2)
        kind = str(getattr(dev, "device_kind", "")).lower()
        if "v7" in kind or "7x" in kind:
            return 2
    except Exception:  # pragma: no cover - conservative fallback
        pass
    return 1


def _choose_block_n(n, block_n, num_cores):
    """Pick the batch-tile size.

    * cap at the batch size,
    * keep the sublane constraint (multiple of 8 unless the block spans the
      whole batch),
    * on single-TC chips (v5e/v6e) never force a split: the grid is a serial
      loop, extra steps are pure per-step overhead,
    * on 2-TC chips (v7x) prefer an EVEN number of grid steps so the
      "parallel" batch axis shards evenly across both TensorCores.
    """
    bn = min(block_n, n)
    if bn != n:
        bn = max((bn // 8) * 8, 8)

    if num_cores >= 2 and n >= 16:
        steps = pl.cdiv(n, bn)
        if steps % 2 == 1:
            target_steps = steps + 1
            bn2 = -(-n // target_steps)            # ceil(n / target_steps)
            bn2 = max(((bn2 + 7) // 8) * 8, 8)     # multiple of 8
            if pl.cdiv(n, bn2) % 2 == 0:
                bn = bn2
    return bn


@functools.partial(jax.jit, static_argnames=("block_n", "compute_dtype"))
def mlp_forward(x, params, *, block_n=1024, compute_dtype=jnp.bfloat16):
    """MLPNet.forward: flatten -> fused Pallas MLP kernel -> (N, 15) logits."""
    n = x.shape[0]
    x2d = x.reshape(n, -1).astype(jnp.float32)          # x.view(x.size(0), -1)
    assert x2d.shape[1] == NUM_FEATURES, x2d.shape
    # TODO(synk): accept bf16 inputs directly from the producer to halve input
    # DMA; adding a standalone f32->bf16 convert here would cost its own HBM
    # round trip, so the cast stays inside the kernel instead.

    # Pre-cast weights ONCE (outside the kernel): halves weight VMEM/DMA and
    # removes ~86K elements of per-grid-step VPU cast work.  Biases stay f32.
    w1 = params["w1"].astype(compute_dtype)
    w2 = params["w2"].astype(compute_dtype)
    w3 = params["w3"].astype(compute_dtype)
    w4 = params["w4"].astype(compute_dtype)

    bn = _choose_block_n(n, block_n, _tensorcores_per_chip())
    # Ragged last block (n % bn != 0) is masked by Pallas: OOB input rows are
    # garbage but their output rows are dropped on store -> no host-side pad.
    grid = (pl.cdiv(n, bn),)

    # Weight/bias blocks: full array, same block for every grid step (constant
    # index_map -> Pallas does not re-issue their DMAs across steps).
    def full_spec(shape):
        return pl.BlockSpec(shape, lambda i: (0, 0))

    kernel = functools.partial(_mlp_kernel, compute_dtype=compute_dtype)

    out = pl.pallas_call(
        kernel,
        out_shape=jax.ShapeDtypeStruct((n, NUM_CLASSES), jnp.float32),
        grid_spec=pltpu.PrefetchScalarGridSpec(
            num_scalar_prefetch=0,
            grid=grid,
            in_specs=[
                pl.BlockSpec((bn, NUM_FEATURES), lambda i: (i, 0)),   # x tile
                full_spec((NUM_FEATURES, H1)),    full_spec((1, H1)),
                full_spec((H1, H2)),              full_spec((1, H2)),
                full_spec((H2, H3)),              full_spec((1, H3)),
                full_spec((H3, NUM_CLASSES)),     full_spec((1, NUM_CLASSES)),
            ],
            # Narrow (N, 15) output block: last dim equals the full array dim
            # (legal); the masked vst cost (~bn*15 elems/step) is tiny next to
            # the HBM traffic saved by not writing a 128-wide padded slab and
            # re-reading it in a slice pass.
            out_specs=pl.BlockSpec((bn, NUM_CLASSES), lambda i: (i, 0)),
        ),
        compiler_params=pltpu.CompilerParams(
            dimension_semantics=("parallel",),
            # Headroom over v5e's 16 MiB scoped default; actual use is <4 MiB,
            # comfortably within v7x's 64 MiB physical VMEM.
            vmem_limit_bytes=32 * 1024 * 1024,
        ),
    )(x2d,
      w1, params["b1"],
      w2, params["b2"],
      w3, params["b3"],
      w4, params["b4"])

    return out


def _reference_forward(x, params):
    """Pure-JAX reference matching PyTorch semantics (f32 end-to-end)."""
    h = x.reshape(x.shape[0], -1).astype(jnp.float32)
    h = jax.nn.relu(h @ params["w1"] + params["b1"])
    h = jax.nn.relu(h @ params["w2"] + params["b2"])
    h = jax.nn.relu(h @ params["w3"] + params["b3"])
    return h @ params["w4"] + params["b4"]


if __name__ == "__main__":
    key = jax.random.PRNGKey(0)
    k_param, k_x1, k_x2, k_x3 = jax.random.split(key, 4)

    params = init_params(k_param)

    # 1) Small even batch, f32 MXU operands: parity check vs. JAX reference.
    x1 = jax.random.normal(k_x1, (8, NUM_FEATURES), dtype=jnp.float32)
    out1 = jax.block_until_ready(
        mlp_forward(x1, params, compute_dtype=jnp.float32))
    ref1 = _reference_forward(x1, params)
    assert out1.shape == (8, NUM_CLASSES), out1.shape
    assert jnp.allclose(out1, ref1, atol=1e-4, rtol=1e-4), \
        float(jnp.max(jnp.abs(out1 - ref1)))

    # 2) Ragged batch (not a multiple of 8): Pallas masks the tail rows.
    x2 = jax.random.normal(k_x2, (37, NUM_FEATURES), dtype=jnp.float32)
    out2 = jax.block_until_ready(
        mlp_forward(x2, params, compute_dtype=jnp.float32))
    ref2 = _reference_forward(x2, params)
    assert out2.shape == (37, NUM_CLASSES), out2.shape
    assert jnp.allclose(out2, ref2, atol=1e-4, rtol=1e-4), \
        float(jnp.max(jnp.abs(out2 - ref2)))

    # 3) Default fast path (bf16 operands, f32 accumulation), small tile to
    #    exercise a multi-step grid regardless of chip generation.
    x3 = jax.random.normal(k_x3, (100, NUM_FEATURES), dtype=jnp.float32)
    out3 = jax.block_until_ready(mlp_forward(x3, params, block_n=32))
    ref3 = _reference_forward(x3, params)
    assert out3.shape == (100, NUM_CLASSES), out3.shape
    assert jnp.allclose(out3, ref3, atol=5e-2, rtol=5e-2), \
        float(jnp.max(jnp.abs(out3 - ref3)))

    print("KERNEL_OK")
</pallas_src>

<mosaic_0001>
module attributes {stable_mosaic.version = 11 : i64} {
  func.func @_mlp_kernel(%arg0: i32, %arg1: memref<8x78xf32, #tpu.memory_space<vmem>>, %arg2: memref<78x256xf32, #tpu.memory_space<vmem>>, %arg3: memref<1x256xf32, #tpu.memory_space<vmem>>, %arg4: memref<256x128xf32, #tpu.memory_space<vmem>>, %arg5: memref<1x128xf32, #tpu.memory_space<vmem>>, %arg6: memref<128x128xf32, #tpu.memory_space<vmem>>, %arg7: memref<1x128xf32, #tpu.memory_space<vmem>>, %arg8: memref<128x15xf32, #tpu.memory_space<vmem>>, %arg9: memref<1x15xf32, #tpu.memory_space<vmem>>, %arg10: memref<8x15xf32, #tpu.memory_space<vmem>>) attributes {dimension_semantics = [#tpu.dimension_semantics<parallel>], iteration_bounds = array<i64: 1>, scalar_prefetch = 0 : i64, scratch_operands = 0 : i64, tpu.core_type = #tpu.core_type<tc>, window_params = [{transform_indices = @transform_0, window_bounds = array<i64: 8, 78>}, {pipeline_mode = #tpu.pipeline_mode<synchronous>, transform_indices = @transform_1, window_bounds = array<i64: 78, 256>}, {pipeline_mode = #tpu.pipeline_mode<synchronous>, transform_indices = @transform_2, window_bounds = array<i64: 1, 256>}, {pipeline_mode = #tpu.pipeline_mode<synchronous>, transform_indices = @transform_3, window_bounds = array<i64: 256, 128>}, {pipeline_mode = #tpu.pipeline_mode<synchronous>, transform_indices = @transform_4, window_bounds = array<i64: 1, 128>}, {pipeline_mode = #tpu.pipeline_mode<synchronous>, transform_indices = @transform_5, window_bounds = array<i64: 128, 128>}, {pipeline_mode = #tpu.pipeline_mode<synchronous>, transform_indices = @transform_6, window_bounds = array<i64: 1, 128>}, {pipeline_mode = #tpu.pipeline_mode<synchronous>, transform_indices = @transform_7, window_bounds = array<i64: 128, 15>}, {pipeline_mode = #tpu.pipeline_mode<synchronous>, transform_indices = @transform_8, window_bounds = array<i64: 1, 15>}, {transform_indices = @transform_9, window_bounds = array<i64: 8, 15>}]} {
    %c0 = arith.constant 0 : index
    %c0_0 = arith.constant 0 : index
    %0 = vector.load %arg1[%c0, %c0_0] : memref<8x78xf32, #tpu.memory_space<vmem>>, vector<8x78xf32>
    %c0_1 = arith.constant 0 : index
    %c0_2 = arith.constant 0 : index
    %1 = vector.load %arg2[%c0_1, %c0_2] : memref<78x256xf32, #tpu.memory_space<vmem>>, vector<78x256xf32>
    %cst = arith.constant dense<0.000000e+00> : vector<8x256xf32>
    %2 = tpu.matmul %0, %1, %cst {dimension_numbers = #tpu.dot_dimension_numbers<[1], [0], [0], [1], [0, 0, 1, 1], [], []>} : vector<8x78xf32>, vector<78x256xf32>, vector<8x256xf32> -> vector<8x256xf32>
    %c0_3 = arith.constant 0 : index
    %c0_4 = arith.constant 0 : index
    %3 = vector.load %arg3[%c0_3, %c0_4] : memref<1x256xf32, #tpu.memory_space<vmem>>, vector<1x256xf32>
    %4 = vector.broadcast %3 : vector<1x256xf32> to vector<8x256xf32>
    %5 = arith.addf %2, %4 : vector<8x256xf32>
    %cst_5 = arith.constant 0.000000e+00 : f32
    %6 = vector.broadcast %cst_5 : f32 to vector<8x256xf32>
    %7 = arith.maximumf %5, %6 : vector<8x256xf32>
    %c0_6 = arith.constant 0 : index
    %c0_7 = arith.constant 0 : index
    %8 = vector.load %arg4[%c0_6, %c0_7] : memref<256x128xf32, #tpu.memory_space<vmem>>, vector<256x128xf32>
    %cst_8 = arith.constant dense<0.000000e+00> : vector<8x128xf32>
    %9 = tpu.matmul %7, %8, %cst_8 {dimension_numbers = #tpu.dot_dimension_numbers<[1], [0], [0], [1], [0, 0, 1, 1], [], []>} : vector<8x256xf32>, vector<256x128xf32>, vector<8x128xf32> -> vector<8x128xf32>
    %c0_9 = arith.constant 0 : index
    %c0_10 = arith.constant 0 : index
    %10 = vector.load %arg5[%c0_9, %c0_10] : memref<1x128xf32, #tpu.memory_space<vmem>>, vector<1x128xf32>
    %11 = vector.broadcast %10 : vector<1x128xf32> to vector<8x128xf32>
    %12 = arith.addf %9, %11 : vector<8x128xf32>
    %cst_11 = arith.constant 0.000000e+00 : f32
    %13 = vector.broadcast %cst_11 : f32 to vector<8x128xf32>
    %14 = arith.maximumf %12, %13 : vector<8x128xf32>
    %c0_12 = arith.constant 0 : index
    %c0_13 = arith.constant 0 : index
    %15 = vector.load %arg6[%c0_12, %c0_13] : memref<128x128xf32, #tpu.memory_space<vmem>>, vector<128x128xf32>
    %cst_14 = arith.constant dense<0.000000e+00> : vector<8x128xf32>
    %16 = tpu.matmul %14, %15, %cst_14 {dimension_numbers = #tpu.dot_dimension_numbers<[1], [0], [0], [1], [0, 0, 1, 1], [], []>} : vector<8x128xf32>, vector<128x128xf32>, vector<8x128xf32> -> vector<8x128xf32>
    %c0_15 = arith.constant 0 : index
    %c0_16 = arith.constant 0 : index
    %17 = vector.load %arg7[%c0_15, %c0_16] : memref<1x128xf32, #tpu.memory_space<vmem>>, vector<1x128xf32>
    %18 = vector.broadcast %17 : vector<1x128xf32> to vector<8x128xf32>
    %19 = arith.addf %16, %18 : vector<8x128xf32>
    %cst_17 = arith.constant 0.000000e+00 : f32
    %20 = vector.broadcast %cst_17 : f32 to vector<8x128xf32>
    %21 = arith.maximumf %19, %20 : vector<8x128xf32>
    %c0_18 = arith.constant 0 : index
    %c0_19 = arith.constant 0 : index
    %22 = vector.load %arg8[%c0_18, %c0_19] : memref<128x15xf32, #tpu.memory_space<vmem>>, vector<128x15xf32>
    %cst_20 = arith.constant dense<0.000000e+00> : vector<8x15xf32>
    %23 = tpu.matmul %21, %22, %cst_20 {dimension_numbers = #tpu.dot_dimension_numbers<[1], [0], [0], [1], [0, 0, 1, 1], [], []>} : vector<8x128xf32>, vector<128x15xf32>, vector<8x15xf32> -> vector<8x15xf32>
    %c0_21 = arith.constant 0 : index
    %c0_22 = arith.constant 0 : index
    %24 = vector.load %arg9[%c0_21, %c0_22] : memref<1x15xf32, #tpu.memory_space<vmem>>, vector<1x15xf32>
    %25 = vector.broadcast %24 : vector<1x15xf32> to vector<8x15xf32>
    %26 = arith.addf %23, %25 : vector<8x15xf32>
    %c0_23 = arith.constant 0 : index
    %c0_24 = arith.constant 0 : index
    %27 = vector.load %arg10[%c0_23, %c0_24] : memref<8x15xf32, #tpu.memory_space<vmem>>, vector<8x15xf32>
    tpu.vector_store %arg10[%c0_23, %c0_24], %26 {strides = array<i32>} : memref<8x15xf32, #tpu.memory_space<vmem>>, vector<8x15xf32>,
    return
  }
  func.func @transform_0(%arg0: i32) -> (i32, i32) {
    %c0_i32 = arith.constant 0 : i32
    %c0_i32_0 = arith.constant 0 : i32
    return %arg0, %c0_i32 : i32, i32
  }
  func.func @transform_1(%arg0: i32) -> (i32, i32) {
    %c0_i32 = arith.constant 0 : i32
    %c0_i32_0 = arith.constant 0 : i32
    %c0_i32_1 = arith.constant 0 : i32
    return %c0_i32, %c0_i32_0 : i32, i32
  }
  func.func @transform_2(%arg0: i32) -> (i32, i32) {
    %c0_i32 = arith.constant 0 : i32
    %c0_i32_0 = arith.constant 0 : i32
    %c0_i32_1 = arith.constant 0 : i32
    return %c0_i32, %c0_i32_0 : i32, i32
  }
  func.func @transform_3(%arg0: i32) -> (i32, i32) {
    %c0_i32 = arith.constant 0 : i32
    %c0_i32_0 = arith.constant 0 : i32
    %c0_i32_1 = arith.constant 0 : i32
    return %c0_i32, %c0_i32_0 : i32, i32
  }
  func.func @transform_4(%arg0: i32) -> (i32, i32) {
    %c0_i32 = arith.constant 0 : i32
    %c0_i32_0 = arith.constant 0 : i32
    %c0_i32_1 = arith.constant 0 : i32
    return %c0_i32, %c0_i32_0 : i32, i32
  }
  func.func @transform_5(%arg0: i32) -> (i32, i32) {
    %c0_i32 = arith.constant 0 : i32
    %c0_i32_0 = arith.constant 0 : i32
    %c0_i32_1 = arith.constant 0 : i32
    return %c0_i32, %c0_i32_0 : i32, i32
  }
  func.func @transform_6(%arg0: i32) -> (i32, i32) {
    %c0_i32 = arith.constant 0 : i32
    %c0_i32_0 = arith.constant 0 : i32
    %c0_i32_1 = arith.constant 0 : i32
    return %c0_i32, %c0_i32_0 : i32, i32
  }
  func.func @transform_7(%arg0: i32) -> (i32, i32) {
    %c0_i32 = arith.constant 0 : i32
    %c0_i32_0 = arith.constant 0 : i32
    %c0_i32_1 = arith.constant 0 : i32
    return %c0_i32, %c0_i32_0 : i32, i32
  }
  func.func @transform_8(%arg0: i32) -> (i32, i32) {
    %c0_i32 = arith.constant 0 : i32
    %c0_i32_0 = arith.constant 0 : i32
    %c0_i32_1 = arith.constant 0 : i32
    return %c0_i32, %c0_i32_0 : i32, i32
  }
  func.func @transform_9(%arg0: i32) -> (i32, i32) {
    %c0_i32 = arith.constant 0 : i32
    %c0_i32_0 = arith.constant 0 : i32
    return %arg0, %c0_i32 : i32, i32
  }
}

</mosaic_0001>

<llo_original>
// kernel: mlp_forward.1
$region0: #{mlp_forward.1}
  #allocation0 [shape = 'u32[]', space=smem, size = 0x4, offset = 0x4, fixed_abs, tag = 'smem constant byte address 0x4 - core index']
  #allocation1 [shape = 'u32[144,128]{1,0:T(1,128)}', space=vmem, size = 0x12000, scoped, tag = 'internal scratch']
  %s0 = inlined_call_operand.vmem [shape: f32[8,78], index: 0, kind: input, shape index: {}]
  %s1 = inlined_call_operand.hbm [shape: f32[78,256], index: 1, kind: input, shape index: {}]
  %s2 = inlined_call_operand.vmem [shape: f32[1,256], index: 2, kind: input, shape index: {}]
  %s3 = inlined_call_operand.hbm [shape: f32[256,128], index: 3, kind: input, shape index: {}]
  %s4 = inlined_call_operand.vmem [shape: f32[1,128], index: 4, kind: input, shape index: {}]
  %s5 = inlined_call_operand.vmem [shape: f32[128,128], index: 5, kind: input, shape index: {}]
  %s6 = inlined_call_operand.vmem [shape: f32[1,128], index: 6, kind: input, shape index: {}]
  %s7 = inlined_call_operand.vmem [shape: f32[128,15], index: 7, kind: input, shape index: {}]
  %s8 = inlined_call_operand.vmem [shape: f32[1,15], index: 8, kind: input, shape index: {}]
  %s9 = inlined_call_operand.hbm [shape: f32[8,15], index: 9, kind: output, shape index: {}]
  %s10 = sld [smem:[#allocation0]]
  $region54: #{mlp_forward.1} parent=0
    _
  %s12 = ssub.s32 1, %s10
  %s13 = scalar_select 0, %s12, %s10
  $region1: #{mlp_forward.1} parent=0
    #allocation2 [shape = 'u8[81920]{0}', space=vmem, size = 0x14000, scoped, tag = 'input window, operand 1, single buffered']
    #allocation3 [shape = 's32[1]{0}', space=sflag, size = 0x4, scoped, tag = 'scoped memory for mlp_forward.1']
    #allocation4 [shape = 's32[1]{0}', space=sflag, size = 0x4, scoped, tag = 'scoped memory for mlp_forward.1']
    #allocation5 [shape = 'u8[131072]{0}', space=vmem, size = 0x20000, scoped, tag = 'input window, operand 3, single buffered']
    #allocation6 [shape = 's32[1]{0}', space=sflag, size = 0x4, scoped, tag = 'scoped memory for mlp_forward.1']
    #allocation7 [shape = 'u8[4096]{0}', space=vmem, size = 0x1000, scoped, tag = 'output window, operand 0, single buffered']
    %14 = vsyncpa [#allocation3], 0
    %15 = vsyncpa [#allocation6], 0
    %16 = vsyncpa [#allocation4], 0
    // Predicated region
    $region2: #{mlp_forward.1} parent=1 // pred_check
      _
    $region3: #{mlp_forward.1} parent=1 // pred_check_branch
      %18 = sbr.rel (0) target = $region5
    $region4: #{mlp_forward.1} parent=1 // pred_region
      _
    $region5: #{mlp_forward.1} parent=1 // pred_fallthru
      _
    // Predicated region
    $region6: #{mlp_forward.1} parent=1 // pred_check
      _
    $region7: #{mlp_forward.1} parent=1 // pred_check_branch
      %20 = sbr.rel (0) target = $region9
    $region8: #{mlp_forward.1} parent=1 // pred_region
      %s22 = ssub.s32 2560, 2560
      %23 = vsyncadd [#allocation3], %s22
      %s24 = sshll.u32 [#allocation2], 4
      %s25 = int_to_ptr.vmem [resolvable:$true] %s24
      %30 = dma.hbm_to_vmem [thread:$0]  %s1, 2560, %s25, [#allocation3], 256, 256, 16
    $region9: #{mlp_forward.1} parent=1 // pred_fallthru
      _
    // Predicated region
    $region10: #{mlp_forward.1} parent=1 // pred_check
      _
    $region11: #{mlp_forward.1} parent=1 // pred_check_branch
      %32 = sbr.rel (0) target = $region13
    $region12: #{mlp_forward.1} parent=1 // pred_region
      _
    $region13: #{mlp_forward.1} parent=1 // pred_fallthru
      _
    // Predicated region
    $region14: #{mlp_forward.1} parent=1 // pred_check
      _
    $region15: #{mlp_forward.1} parent=1 // pred_check_branch
      %34 = sbr.rel (0) target = $region17
    $region16: #{mlp_forward.1} parent=1 // pred_region
      %s36 = ssub.s32 4096, 4096
      %37 = vsyncadd [#allocation6], %s36
      %s38 = sshll.u32 [#allocation5], 4
      %s39 = int_to_ptr.vmem [resolvable:$true] %s38
      %44 = dma.hbm_to_vmem [thread:$0]  %s3, 4096, %s39, [#allocation6], 128, 128, 8
    $region17: #{mlp_forward.1} parent=1 // pred_fallthru
      _
    // Predicated region
    $region18: #{mlp_forward.1} parent=1 // pred_check
      _
    $region19: #{mlp_forward.1} parent=1 // pred_check_branch
      %46 = sbr.rel (0) target = $region21
    $region20: #{mlp_forward.1} parent=1 // pred_region
      _
    $region21: #{mlp_forward.1} parent=1 // pred_fallthru
      _
    // Predicated region
    $region22: #{mlp_forward.1} parent=1 // pred_check
      _
    $region23: #{mlp_forward.1} parent=1 // pred_check_branch
      %48 = sbr.rel (0) target = $region25
    $region24: #{mlp_forward.1} parent=1 // pred_region
      _
    $region25: #{mlp_forward.1} parent=1 // pred_fallthru
      _
    // Predicated region
    $region26: #{mlp_forward.1} parent=1 // pred_check
      _
    $region27: #{mlp_forward.1} parent=1 // pred_check_branch
      %50 = sbr.rel (0) target = $region29
    $region28: #{mlp_forward.1} parent=1 // pred_region
      _
    $region29: #{mlp_forward.1} parent=1 // pred_fallthru
      _
    // Predicated region
    $region30: #{mlp_forward.1} parent=1 // pred_check
      _
    $region31: #{mlp_forward.1} parent=1 // pred_check_branch
      %52 = sbr.rel (0) target = $region33
    $region32: #{mlp_forward.1} parent=1 // pred_region
      _
    $region33: #{mlp_forward.1} parent=1 // pred_fallthru
      _
    // Predicated region
    $region34: #{mlp_forward.1} parent=1 // pred_check
      _
    $region35: #{mlp_forward.1} parent=1 // pred_check_branch
      %54 = sbr.rel (0) target = $region37
    $region36: #{mlp_forward.1} parent=1 // pred_region
      _
    $region37: #{mlp_forward.1} parent=1 // pred_fallthru
      _
    // Predicated region
    $region38: #{mlp_forward.1} parent=1 // pred_check
      _
    $region39: #{mlp_forward.1} parent=1 // pred_check_branch
      %56 = sbr.rel (0) target = $region41
    $region40: #{mlp_forward.1} parent=1 // pred_region
      %57 = dma.done [#allocation3], 2560
    $region41: #{mlp_forward.1} parent=1 // pred_fallthru
      _
    // Predicated region
    $region42: #{mlp_forward.1} parent=1 // pred_check
      _
    $region43: #{mlp_forward.1} parent=1 // pred_check_branch
      %59 = sbr.rel (0) target = $region45
    $region44: #{mlp_forward.1} parent=1 // pred_region
      %60 = dma.done [#allocation6], 4096
    $region45: #{mlp_forward.1} parent=1 // pred_fallthru
      _
    %v61 = vld [vmem:[%s0] sm:$0xff]
    %v62 = vld [vmem:[#allocation2] sm:$0xff]
    %v63 = vld [vmem:[#allocation2 + $0x8] sm:$0xff]
    %v64 = vld [vmem:[#allocation2 + $0x10] sm:$0xff]
    %v65 = vld [vmem:[#allocation2 + $0x18] sm:$0xff]
    %v66 = vld [vmem:[#allocation2 + $0x20] sm:$0xff]
    %v67 = vld [vmem:[#allocation2 + $0x28] sm:$0xff]
    %v68 = vld [vmem:[#allocation2 + $0x30] sm:$0xff]
    %v69 = vld [vmem:[#allocation2 + $0x38] sm:$0xff]
    %v70 = vld [vmem:[#allocation2 + $0x40] sm:$0xff]
    %v71 = vld [vmem:[#allocation2 + $0x48] sm:$0xff]
    %v72 = vld [vmem:[#allocation2 + $0x50] sm:$0xff]
    %v73 = vld [vmem:[#allocation2 + $0x58] sm:$0xff]
    %v74 = vld [vmem:[#allocation2 + $0x60] sm:$0xff]
    %v75 = vld [vmem:[#allocation2 + $0x68] sm:$0xff]
    %v76 = vld [vmem:[#allocation2 + $0x70] sm:$0xff]
    %v77 = vld [vmem:[#allocation2 + $0x78] sm:$0xff]
    %v78 = vld [vmem:[#allocation2 + $0x80] sm:$0xff]
    %v79 = vld [vmem:[#allocation2 + $0x88] sm:$0xff]
    %v80 = vld [vmem:[#allocation2 + $0x90] sm:$0x3f]
    %v81 = vld [vmem:[#allocation2 + $0x98] sm:$0x3f]
    %v82 = vld [vmem:[%s2] sm:$0x3]
    %v84 = vlaneseq
    %v85 = vshrl.u32 %v84, 7
    %v86 = vsub.s32 0, %v85
    %v87 = vrot.slane %v82, %v86
    %v88 = vlaneseq
    %v89 = vshrl.u32 %v88, 7
    %v90 = vsub.s32 1, %v89
    %v91 = vrot.slane %v82, %v90
    %vm94 = vcmask 637952
    %v96 = vsel %vm94, %v61, 0
    %vm98 = vcmask 1045504
    %v100 = vsel %vm98, %v80, 0
    %v103 = vsel %vm98, %v81, 0
    %105 = vmatprep.subr.mxu0 0.0
    %106 = vmatpush1.msra.mxu0 0.0
    %107 = vmatprep.subr.mxu0 0.0
    %108 = vmatpush1.msra.mxu0 0.0
    %109 = vmatprep.subr.mxu0 0.0
    %110 = vmatpush1.msra.mxu0 0.0
    %111 = vmatprep.subr.mxu0 0.0
    %112 = vmatpush1.msra.mxu0 0.0
    %113 = vmatprep.subr.mxu0 0.0
    %114 = vmatpush1.msra.mxu0 0.0
    %115 = vmatprep.subr.mxu0 0.0
    %116 = vmatpush1.msra.mxu0 0.0
    %117 = vmatprep.subr.mxu0 %v103
    %118 = vmatpush1.msra.mxu0 %v100
    %119 = vmatprep.subr.mxu0 %v79
    %120 = vmatpush1.msra.mxu0 %v78
    %121 = vmatprep.subr.mxu0 %v77
    %122 = vmatpush1.msra.mxu0 %v76
    %123 = vmatprep.subr.mxu0 %v75
    %124 = vmatpush1.msra.mxu0 %v74
    %125 = vmatprep.subr.mxu0 %v73
    %126 = vmatpush1.msra.mxu0 %v72
    %127 = vmatprep.subr.mxu0 %v71
    %128 = vmatpush1.msra.mxu0 %v70
    %129 = vmatprep.subr.mxu0 %v69
    %130 = vmatpush1.msra.mxu0 %v68
    %131 = vmatprep.subr.mxu0 %v67
    %132 = vmatpush1.msra.mxu0 %v66
    %133 = vmatprep.subr.mxu0 %v65
    %134 = vmatpush1.msra.mxu0 %v64
    %135 = vmatprep.subr.mxu0 %v63
    %136 = vmatpush1.msra.mxu0 %v62
    %137 = vmatprep.subr.mxu0 0.0
    %138 = vmatpush2.msra.mxu0 0.0
    %139 = vmatprep.subr.mxu0 0.0
    %140 = vmatpush2.msra.mxu0 0.0
    %141 = vmatprep.subr.mxu0 0.0
    %142 = vmatpush2.msra.mxu0 0.0
    %143 = vmatprep.subr.mxu0 0.0
    %144 = vmatpush2.msra.mxu0 0.0
    %145 = vmatprep.subr.mxu0 0.0
    %146 = vmatpush2.msra.mxu0 0.0
    %147 = vmatprep.subr.mxu0 0.0
    %148 = vmatpush2.msra.mxu0 0.0
    %149 = vmatprep.subr.mxu0 0.0
    %150 = vmatpush2.msra.mxu0 0.0
    %151 = vmatprep.subr.mxu0 0.0
    %152 = vmatpush2.msra.mxu0 0.0
    %153 = vmatprep.subr.mxu0 0.0
    %154 = vmatpush2.msra.mxu0 0.0
    %155 = vmatprep.subr.mxu0 0.0
    %156 = vmatpush2.msra.mxu0 0.0
    %157 = vmatprep.subr.mxu0 0.0
    %158 = vmatpush2.msra.mxu0 0.0
    %159 = vmatprep.subr.mxu0 0.0
    %160 = vmatpush2.msra.mxu0 0.0
    %161 = vmatprep.subr.mxu0 0.0
    %162 = vmatpush2.msra.mxu0 0.0
    %163 = vmatprep.subr.mxu0 0.0
    %164 = vmatpush2.msra.mxu0 0.0
    %165 = vmatprep.subr.mxu0 0.0
    %166 = vmatpush2.msra.mxu0 0.0
    %167 = vmatprep.subr.mxu0 0.0
    %168 = vmatpush2.msra.mxu0 0.0
    %169 = vmatprep.mubr.f32.mxu0 0.0
    %170 = vmatmul.mubr.f32.gmra.mxu0 %v96
    %v171 = vpop.f32.mrf.mxu0
    %v172 = vadd.f32 %v87, %v171
    %v173 = vpop.f32.mrf.mxu0
    %v174 = vadd.f32 %v91, %v173
    %175 = vdwg.mxu0
    %v176 = vmax.f32 %v172, 0.0
    %v177 = vmax.f32 %v174, 0.0
    %v178 = vld [vmem:[#allocation5] sm:$0xff]
    %v179 = vld [vmem:[#allocation5 + $0x8] sm:$0xff]
    %v180 = vld [vmem:[#allocation5 + $0x10] sm:$0xff]
    %v181 = vld [vmem:[#allocation5 + $0x18] sm:$0xff]
    %v182 = vld [vmem:[#allocation5 + $0x20] sm:$0xff]
    %v183 = vld [vmem:[#allocation5 + $0x28] sm:$0xff]
    %v184 = vld [vmem:[#allocation5 + $0x30] sm:$0xff]
    %v185 = vld [vmem:[#allocation5 + $0x38] sm:$0xff]
    %v186 = vld [vmem:[#allocation5 + $0x40] sm:$0xff]
    %v187 = vld [vmem:[#allocation5 + $0x48] sm:$0xff]
    %v188 = vld [vmem:[#allocation5 + $0x50] sm:$0xff]
    %v189 = vld [vmem:[#allocation5 + $0x58] sm:$0xff]
    %v190 = vld [vmem:[#allocation5 + $0x60] sm:$0xff]
    %v191 = vld [vmem:[#allocation5 + $0x68] sm:$0xff]
    %v192 = vld [vmem:[#allocation5 + $0x70] sm:$0xff]
    %v193 = vld [vmem:[#allocation5 + $0x78] sm:$0xff]
    %v194 = vld [vmem:[#allocation5 + $0x80] sm:$0xff]
    %v195 = vld [vmem:[#allocation5 + $0x88] sm:$0xff]
    %v196 = vld [vmem:[#allocation5 + $0x90] sm:$0xff]
    %v197 = vld [vmem:[#allocation5 + $0x98] sm:$0xff]
    %v198 = vld [vmem:[#allocation5 + $0xa0] sm:$0xff]
    %v199 = vld [vmem:[#allocation5 + $0xa8] sm:$0xff]
    %v200 = vld [vmem:[#allocation5 + $0xb0] sm:$0xff]
    %v201 = vld [vmem:[#allocation5 + $0xb8] sm:$0xff]
    %v202 = vld [vmem:[#allocation5 + $0xc0] sm:$0xff]
    %v203 = vld [vmem:[#allocation5 + $0xc8] sm:$0xff]
    %v204 = vld [vmem:[#allocation5 + $0xd0] sm:$0xff]
    %v205 = vld [vmem:[#allocation5 + $0xd8] sm:$0xff]
    %v206 = vld [vmem:[#allocation5 + $0xe0] sm:$0xff]
    %v207 = vld [vmem:[#allocation5 + $0xe8] sm:$0xff]
    %v208 = vld [vmem:[#allocation5 + $0xf0] sm:$0xff]
    %v209 = vld [vmem:[#allocation5 + $0xf8] sm:$0xff]
    %v210 = vld [vmem:[%s4] sm:$0x1]
    %v212 = vlaneseq
    %v213 = vshrl.u32 %v212, 7
    %v214 = vsub.s32 0, %v213
    %v215 = vrot.slane %v210, %v214
    %217 = vmatprep.subr.mxu0 0.0
    %218 = vmatpush1.msra.mxu0 %v193
    %219 = vmatprep.subr.mxu0 0.0
    %220 = vmatpush1.msra.mxu0 %v192
    %221 = vmatprep.subr.mxu0 0.0
    %222 = vmatpush1.msra.mxu0 %v191
    %223 = vmatprep.subr.mxu0 0.0
    %224 = vmatpush1.msra.mxu0 %v190
    %225 = vmatprep.subr.mxu0 0.0
    %226 = vmatpush1.msra.mxu0 %v189
    %227 = vmatprep.subr.mxu0 0.0
    %228 = vmatpush1.msra.mxu0 %v188
    %229 = vmatprep.subr.mxu0 0.0
    %230 = vmatpush1.msra.mxu0 %v187
    %231 = vmatprep.subr.mxu0 0.0
    %232 = vmatpush1.msra.mxu0 %v186
    %233 = vmatprep.subr.mxu0 0.0
    %234 = vmatpush1.msra.mxu0 %v185
    %235 = vmatprep.subr.mxu0 0.0
    %236 = vmatpush1.msra.mxu0 %v184
    %237 = vmatprep.subr.mxu0 0.0
    %238 = vmatpush1.msra.mxu0 %v183
    %239 = vmatprep.subr.mxu0 0.0
    %240 = vmatpush1.msra.mxu0 %v182
    %241 = vmatprep.subr.mxu0 0.0
    %242 = vmatpush1.msra.mxu0 %v181
    %243 = vmatprep.subr.mxu0 0.0
    %244 = vmatpush1.msra.mxu0 %v180
    %245 = vmatprep.subr.mxu0 0.0
    %246 = vmatpush1.msra.mxu0 %v179
    %247 = vmatprep.subr.mxu0 0.0
    %248 = vmatpush1.msra.mxu0 %v178
    %249 = vmatprep.subr.mxu0 0.0
    %250 = vmatpush2.msra.mxu0 %v209
    %251 = vmatprep.subr.mxu0 0.0
    %252 = vmatpush2.msra.mxu0 %v208
    %253 = vmatprep.subr.mxu0 0.0
    %254 = vmatpush2.msra.mxu0 %v207
    %255 = vmatprep.subr.mxu0 0.0
    %256 = vmatpush2.msra.mxu0 %v206
    %257 = vmatprep.subr.mxu0 0.0
    %258 = vmatpush2.msra.mxu0 %v205
    %259 = vmatprep.subr.mxu0 0.0
    %260 = vmatpush2.msra.mxu0 %v204
    %261 = vmatprep.subr.mxu0 0.0
    %262 = vmatpush2.msra.mxu0 %v203
    %263 = vmatprep.subr.mxu0 0.0
    %264 = vmatpush2.msra.mxu0 %v202
    %265 = vmatprep.subr.mxu0 0.0
    %266 = vmatpush2.msra.mxu0 %v201
    %267 = vmatprep.subr.mxu0 0.0
    %268 = vmatpush2.msra.mxu0 %v200
    %269 = vmatprep.subr.mxu0 0.0
    %270 = vmatpush2.msra.mxu0 %v199
    %271 = vmatprep.subr.mxu0 0.0
    %272 = vmatpush2.msra.mxu0 %v198
    %273 = vmatprep.subr.mxu0 0.0
    %274 = vmatpush2.msra.mxu0 %v197
    %275 = vmatprep.subr.mxu0 0.0
    %276 = vmatpush2.msra.mxu0 %v196
    %277 = vmatprep.subr.mxu0 0.0
    %278 = vmatpush2.msra.mxu0 %v195
    %279 = vmatprep.subr.mxu0 0.0
    %280 = vmatpush2.msra.mxu0 %v194
    %281 = vmatprep.mubr.f32.mxu0 %v177
    %282 = vmatmul.mubr.f32.gmra.mxu0 %v176
    %v283 = vpop.f32.mrf.mxu0
    %v284 = vadd.f32 %v215, %v283
    %v285 = vpop.f32.mrf.mxu0
    %286 = vdwg.mxu0
    %v287 = vmax.f32 %v284, 0.0
    %v288 = vld [vmem:[%s5] sm:$0xff]
    %v289 = vld [vmem:[%s5 + $0x8] sm:$0xff]
    %v290 = vld [vmem:[%s5 + $0x10] sm:$0xff]
    %v291 = vld [vmem:[%s5 + $0x18] sm:$0xff]
    %v292 = vld [vmem:[%s5 + $0x20] sm:$0xff]
    %v293 = vld [vmem:[%s5 + $0x28] sm:$0xff]
    %v294 = vld [vmem:[%s5 + $0x30] sm:$0xff]
    %v295 = vld [vmem:[%s5 + $0x38] sm:$0xff]
    %v296 = vld [vmem:[%s5 + $0x40] sm:$0xff]
    %v297 = vld [vmem:[%s5 + $0x48] sm:$0xff]
    %v298 = vld [vmem:[%s5 + $0x50] sm:$0xff]
    %v299 = vld [vmem:[%s5 + $0x58] sm:$0xff]
    %v300 = vld [vmem:[%s5 + $0x60] sm:$0xff]
    %v301 = vld [vmem:[%s5 + $0x68] sm:$0xff]
    %v302 = vld [vmem:[%s5 + $0x70] sm:$0xff]
    %v303 = vld [vmem:[%s5 + $0x78] sm:$0xff]
    %v304 = vld [vmem:[%s6] sm:$0x1]
    %v306 = vlaneseq
    %v307 = vshrl.u32 %v306, 7
    %v308 = vsub.s32 0, %v307
    %v309 = vrot.slane %v304, %v308
    %311 = vmatprep.subr.mxu0 0.0
    %312 = vmatpush1.msra.mxu0 %v303
    %313 = vmatprep.subr.mxu0 0.0
    %314 = vmatpush1.msra.mxu0 %v302
    %315 = vmatprep.subr.mxu0 0.0
    %316 = vmatpush1.msra.mxu0 %v301
    %317 = vmatprep.subr.mxu0 0.0
    %318 = vmatpush1.msra.mxu0 %v300
    %319 = vmatprep.subr.mxu0 0.0
    %320 = vmatpush1.msra.mxu0 %v299
    %321 = vmatprep.subr.mxu0 0.0
    %322 = vmatpush1.msra.mxu0 %v298
    %323 = vmatprep.subr.mxu0 0.0
    %324 = vmatpush1.msra.mxu0 %v297
    %325 = vmatprep.subr.mxu0 0.0
    %326 = vmatpush1.msra.mxu0 %v296
    %327 = vmatprep.subr.mxu0 0.0
    %328 = vmatpush1.msra.mxu0 %v295
    %329 = vmatprep.subr.mxu0 0.0
    %330 = vmatpush1.msra.mxu0 %v294
    %331 = vmatprep.subr.mxu0 0.0
    %332 = vmatpush1.msra.mxu0 %v293
    %333 = vmatprep.subr.mxu0 0.0
    %334 = vmatpush1.msra.mxu0 %v292
    %335 = vmatprep.subr.mxu0 0.0
    %336 = vmatpush1.msra.mxu0 %v291
    %337 = vmatprep.subr.mxu0 0.0
    %338 = vmatpush1.msra.mxu0 %v290
    %339 = vmatprep.subr.mxu0 0.0
    %340 = vmatpush1.msra.mxu0 %v289
    %341 = vmatprep.subr.mxu0 0.0
    %342 = vmatpush1.msra.mxu0 %v288
    %343 = vmatprep.subr.mxu0 0.0
    %344 = vmatpush2.msra.mxu0 0.0
    %345 = vmatprep.subr.mxu0 0.0
    %346 = vmatpush2.msra.mxu0 0.0
    %347 = vmatprep.subr.mxu0 0.0
    %348 = vmatpush2.msra.mxu0 0.0
    %349 = vmatprep.subr.mxu0 0.0
    %350 = vmatpush2.msra.mxu0 0.0
    %351 = vmatprep.subr.mxu0 0.0
    %352 = vmatpush2.msra.mxu0 0.0
    %353 = vmatprep.subr.mxu0 0.0
    %354 = vmatpush2.msra.mxu0 0.0
    %355 = vmatprep.subr.mxu0 0.0
    %356 = vmatpush2.msra.mxu0 0.0
    %357 = vmatprep.subr.mxu0 0.0
    %358 = vmatpush2.msra.mxu0 0.0
    %359 = vmatprep.subr.mxu0 0.0
    %360 = vmatpush2.msra.mxu0 0.0
    %361 = vmatprep.subr.mxu0 0.0
    %362 = vmatpush2.msra.mxu0 0.0
    %363 = vmatprep.subr.mxu0 0.0
    %364 = vmatpush2.msra.mxu0 0.0
    %365 = vmatprep.subr.mxu0 0.0
    %366 = vmatpush2.msra.mxu0 0.0
    %367 = vmatprep.subr.mxu0 0.0
    %368 = vmatpush2.msra.mxu0 0.0
    %369 = vmatprep.subr.mxu0 0.0
    %370 = vmatpush2.msra.mxu0 0.0
    %371 = vmatprep.subr.mxu0 0.0
    %372 = vmatpush2.msra.mxu0 0.0
    %373 = vmatprep.subr.mxu0 0.0
    %374 = vmatpush2.msra.mxu0 0.0
    %375 = vmatprep.mubr.f32.mxu0 0.0
    %376 = vmatmul.mubr.f32.gmra.mxu0 %v287
    %v377 = vpop.f32.mrf.mxu0
    %v378 = vadd.f32 %v309, %v377
    %v379 = vpop.f32.mrf.mxu0
    %380 = vdwg.mxu0
    %v381 = vmax.f32 %v378, 0.0
    %v382 = vld [vmem:[%s7] sm:$0xff]
    %v383 = vld [vmem:[%s7 + $0x8] sm:$0xff]
    %v384 = vld [vmem:[%s7 + $0x10] sm:$0xff]
    %v385 = vld [vmem:[%s7 + $0x18] sm:$0xff]
    %v386 = vld [vmem:[%s7 + $0x20] sm:$0xff]
    %v387 = vld [vmem:[%s7 + $0x28] sm:$0xff]
    %v388 = vld [vmem:[%s7 + $0x30] sm:$0xff]
    %v389 = vld [vmem:[%s7 + $0x38] sm:$0xff]
    %v390 = vld [vmem:[%s7 + $0x40] sm:$0xff]
    %v391 = vld [vmem:[%s7 + $0x48] sm:$0xff]
    %v392 = vld [vmem:[%s7 + $0x50] sm:$0xff]
    %v393 = vld [vmem:[%s7 + $0x58] sm:$0xff]
    %v394 = vld [vmem:[%s7 + $0x60] sm:$0xff]
    %v395 = vld [vmem:[%s7 + $0x68] sm:$0xff]
    %v396 = vld [vmem:[%s7 + $0x70] sm:$0xff]
    %v397 = vld [vmem:[%s7 + $0x78] sm:$0xff]
    %v398 = vld [vmem:[%s8] sm:$0x1]
    %v400 = vlaneseq
    %v401 = vshrl.u32 %v400, 7
    %v402 = vsub.s32 0, %v401
    %v403 = vrot.slane %v398, %v402
    %405 = vmatprep.subr.mxu0 0.0
    %406 = vmatpush1.msra.mxu0 %v397
    %407 = vmatprep.subr.mxu0 0.0
    %408 = vmatpush1.msra.mxu0 %v396
    %409 = vmatprep.subr.mxu0 0.0
    %410 = vmatpush1.msra.mxu0 %v395
    %411 = vmatprep.subr.mxu0 0.0
    %412 = vmatpush1.msra.mxu0 %v394
    %413 = vmatprep.subr.mxu0 0.0
    %414 = vmatpush1.msra.mxu0 %v393
    %415 = vmatprep.subr.mxu0 0.0
    %416 = vmatpush1.msra.mxu0 %v392
    %417 = vmatprep.subr.mxu0 0.0
    %418 = vmatpush1.msra.mxu0 %v391
    %419 = vmatprep.subr.mxu0 0.0
    %420 = vmatpush1.msra.mxu0 %v390
    %421 = vmatprep.subr.mxu0 0.0
    %422 = vmatpush1.msra.mxu0 %v389
    %423 = vmatprep.subr.mxu0 0.0
    %424 = vmatpush1.msra.mxu0 %v388
    %425 = vmatprep.subr.mxu0 0.0
    %426 = vmatpush1.msra.mxu0 %v387
    %427 = vmatprep.subr.mxu0 0.0
    %428 = vmatpush1.msra.mxu0 %v386
    %429 = vmatprep.subr.mxu0 0.0
    %430 = vmatpush1.msra.mxu0 %v385
    %431 = vmatprep.subr.mxu0 0.0
    %432 = vmatpush1.msra.mxu0 %v384
    %433 = vmatprep.subr.mxu0 0.0
    %434 = vmatpush1.msra.mxu0 %v383
    %435 = vmatprep.subr.mxu0 0.0
    %436 = vmatpush1.msra.mxu0 %v382
    %437 = vmatprep.subr.mxu0 0.0
    %438 = vmatpush2.msra.mxu0 0.0
    %439 = vmatprep.subr.mxu0 0.0
    %440 = vmatpush2.msra.mxu0 0.0
    %441 = vmatprep.subr.mxu0 0.0
    %442 = vmatpush2.msra.mxu0 0.0
    %443 = vmatprep.subr.mxu0 0.0
    %444 = vmatpush2.msra.mxu0 0.0
    %445 = vmatprep.subr.mxu0 0.0
    %446 = vmatpush2.msra.mxu0 0.0
    %447 = vmatprep.subr.mxu0 0.0
    %448 = vmatpush2.msra.mxu0 0.0
    %449 = vmatprep.subr.mxu0 0.0
    %450 = vmatpush2.msra.mxu0 0.0
    %451 = vmatprep.subr.mxu0 0.0
    %452 = vmatpush2.msra.mxu0 0.0
    %453 = vmatprep.subr.mxu0 0.0
    %454 = vmatpush2.msra.mxu0 0.0
    %455 = vmatprep.subr.mxu0 0.0
    %456 = vmatpush2.msra.mxu0 0.0
    %457 = vmatprep.subr.mxu0 0.0
    %458 = vmatpush2.msra.mxu0 0.0
    %459 = vmatprep.subr.mxu0 0.0
    %460 = vmatpush2.msra.mxu0 0.0
    %461 = vmatprep.subr.mxu0 0.0
    %462 = vmatpush2.msra.mxu0 0.0
    %463 = vmatprep.subr.mxu0 0.0
    %464 = vmatpush2.msra.mxu0 0.0
    %465 = vmatprep.subr.mxu0 0.0
    %466 = vmatpush2.msra.mxu0 0.0
    %467 = vmatprep.subr.mxu0 0.0
    %468 = vmatpush2.msra.mxu0 0.0
    %469 = vmatprep.mubr.f32.mxu0 0.0
    %470 = vmatmul.mubr.f32.gmra.mxu0 %v381
    %v471 = vpop.f32.mrf.mxu0
    %v472 = vadd.f32 %v403, %v471
    %v473 = vpop.f32.mrf.mxu0
    %474 = vdwg.mxu0
    %vm475 = vcmask 121856
    %476 = vst.msk [vmem:[#allocation7] sm:$0xff] %vm475, %v472
    // Predicated region
    $region46: #{mlp_forward.1} parent=1 // pred_check
      _
    $region47: #{mlp_forward.1} parent=1 // pred_check_branch
      %478 = sbr.rel (0) target = $region49
    $region48: #{mlp_forward.1} parent=1 // pred_region
      %s480 = ssub.s32 128, 128
      %481 = vsyncadd [#allocation4], %s480
      %s483 = sshll.u32 [#allocation7], 4
      %s484 = int_to_ptr.vmem [resolvable:$true] %s483
      %486 = dma.vmem_to_hbm [thread:$0]  %s484, 128, %s9, [#allocation4]
    $region49: #{mlp_forward.1} parent=1 // pred_fallthru
      _
    // Predicated region
    $region50: #{mlp_forward.1} parent=1 // pred_check
      _
    $region51: #{mlp_forward.1} parent=1 // pred_check_branch
      %488 = sbr.rel (0) target = $region53
    $region52: #{mlp_forward.1} parent=1 // pred_region
      %489 = dma.done [#allocation4], 128
    $region53: #{mlp_forward.1} parent=1 // pred_fallthru
      _
    %490 = vsyncpa [#allocation3], 1
    %491 = vsyncpa [#allocation6], 1
    %492 = vsyncpa [#allocation4], 1

</llo_original>
